<compile_context>
chip_gen: v7x
topology: tpu7x:2x2x1
jax: 0.10.0
libtpu: 0.0.40
codegen_flags: <defaults>
</compile_context>

<pallas_src>
import math
import numpy as np
import jax
import jax.numpy as jnp
from jax.experimental import pallas as pl
from jax.experimental.pallas import tpu as pltpu

# ---- problem sizes (small, consistent with the module) --------------------
S, B, E, H = 8, 2, 32, 4          # seq, batch, embedding_dim, num_heads
HD = E // H                        # head dim
N = S * B                          # batch folded into matmul rows
EPS = 1e-5                         # nn.LayerNorm default eps

APPROX_GELU = False                # True -> tanh GELU (EUP-friendly on v5e),
                                   # False -> exact erf (torch parity)


# ---- shared math helpers (pure jnp; used both in-kernel and in the ref) ---
def _layernorm(x, w, b):
    mu = jnp.mean(x, axis=-1, keepdims=True)
    var = jnp.mean(jnp.square(x - mu), axis=-1, keepdims=True)
    return (x - mu) * jax.lax.rsqrt(var + EPS) * w + b


def _gelu(x):
    if APPROX_GELU:
        return jax.nn.gelu(x, approximate=True)
    # exact (erf) GELU — matches torch.nn.functional.gelu default
    return 0.5 * x * (1.0 + jax.lax.erf(x * (1.0 / math.sqrt(2.0))))


# ---- Pallas kernel: whole batch in one program ----------------------------
def encoder1d_kernel(x_ref, bias_ref,
                     ln1_w_ref, ln1_b_ref,
                     w_in_ref, b_in_ref, w_out_ref, b_out_ref,
                     ln2_w_ref, ln2_b_ref,
                     fc1_w_ref, fc1_b_ref, fc2_w_ref, fc2_b_ref,
                     o_ref):
    bf16 = jnp.bfloat16
    f32 = jnp.float32

    x = x_ref[...]                                           # (N, E) f32

    # ---- LayerNorm 1 (f32) ----
    xn = _layernorm(x, ln1_w_ref[...], ln1_b_ref[...])

    # ---- fused qkv projection: one (N,E)@(E,3E) MXU dot, bf16 in / f32 acc --
    qkv = jnp.dot(xn.astype(bf16), w_in_ref[...],
                  preferred_element_type=f32) + b_in_ref[...]      # (N, 3E)

    # ---- multi-head self-attention: ONE head-batched einsum pair -----------
    # Heads go into a leading batch dim (static lane slices -> leading stack);
    # the block-diagonal additive bias keeps the B batch elements folded into
    # the N rows from attending to each other.
    def split_heads(cols):                                   # (N, E) -> (H, N, HD)
        return jnp.stack([cols[:, h * HD:(h + 1) * HD] for h in range(H)],
                         axis=0)

    qh = split_heads(qkv[:, 0 * E:1 * E]).astype(bf16)
    kh = split_heads(qkv[:, 1 * E:2 * E]).astype(bf16)
    vh = split_heads(qkv[:, 2 * E:3 * E]).astype(bf16)

    scale = 1.0 / math.sqrt(HD)
    s = jnp.einsum('hqd,hkd->hqk', qh, kh,
                   preferred_element_type=f32) * scale       # (H, N, N) f32
    s = s + bias_ref[...]                                    # block-diag batch mask
    s = s - jnp.max(s, axis=-1, keepdims=True)
    p = jnp.exp(s)
    p = p * pl.reciprocal(jnp.sum(p, axis=-1, keepdims=True), approx=True)

    ctx = jnp.einsum('hqk,hkd->hqd', p.astype(bf16), vh,
                     preferred_element_type=f32)              # (H, N, HD)
    ctx = jnp.concatenate([ctx[h] for h in range(H)], axis=-1)  # (N, E)

    attn = jnp.dot(ctx.astype(bf16), w_out_ref[...],
                   preferred_element_type=f32) + b_out_ref[...]

    # ---- first residual ----
    x2 = x + attn

    # ---- LayerNorm 2 + MLP (Linear -> GELU -> Linear), 2-D dots ----
    y = _layernorm(x2, ln2_w_ref[...], ln2_b_ref[...])
    h1 = _gelu(jnp.dot(y.astype(bf16), fc1_w_ref[...],
                       preferred_element_type=f32) + fc1_b_ref[...])
    mlp = jnp.dot(h1.astype(bf16), fc2_w_ref[...],
                  preferred_element_type=f32) + fc2_b_ref[...]

    # ---- second residual: single lane-contiguous (N, E) store ----
    o_ref[...] = (x2 + mlp).astype(o_ref.dtype)


# ---- one-time parameter preparation (outside the per-call wrapper) --------
def prepare_params(p):
    """Transpose weights for right-multiplication and cast them to bf16 ONCE,
    and build the block-diagonal attention bias for the batch-folded rows."""
    bf16 = jnp.bfloat16
    rows = np.arange(N)
    same = (rows[:, None] % B) == (rows[None, :] % B)        # row r <-> batch r % B
    attn_bias = jnp.asarray(np.where(same, 0.0, -1e30), jnp.float32)   # (N, N)
    return {
        'attn_bias': attn_bias,
        'ln1_w': p['ln1_w'], 'ln1_b': p['ln1_b'],
        'ln2_w': p['ln2_w'], 'ln2_b': p['ln2_b'],
        'w_in':  jnp.asarray(p['w_in'].T,  bf16), 'b_in':  p['b_in'],
        'w_out': jnp.asarray(p['w_out'].T, bf16), 'b_out': p['b_out'],
        'fc1_w': jnp.asarray(p['fc1_w'].T, bf16), 'fc1_b': p['fc1_b'],
        'fc2_w': jnp.asarray(p['fc2_w'].T, bf16), 'fc2_b': p['fc2_b'],
    }


# ---- wrapper: single program, everything resident in VMEM -----------------
def encoder1d_block(x, pp):
    # x: (S, B, E) — torch nn.MultiheadAttention default (seq-first) layout.
    # No wrapper transposes: only a free row-major reshape to (S*B, E).
    xf = x.reshape(N, E)

    args = (xf, pp['attn_bias'],
            pp['ln1_w'], pp['ln1_b'],
            pp['w_in'], pp['b_in'], pp['w_out'], pp['b_out'],
            pp['ln2_w'], pp['ln2_b'],
            pp['fc1_w'], pp['fc1_b'], pp['fc2_w'], pp['fc2_b'])

    out = pl.pallas_call(
        encoder1d_kernel,
        out_shape=jax.ShapeDtypeStruct((N, E), x.dtype),
        in_specs=[pl.BlockSpec(memory_space=pltpu.MemorySpace.VMEM)
                  for _ in args],
        out_specs=pl.BlockSpec(memory_space=pltpu.MemorySpace.VMEM),
        # Single program: at these sizes per-grid-step overhead dominates.
        # At real ViT sizes: grid over fat row-blocks, ("parallel",) for v7x
        # megacore, pl.Buffered(1) on the constant weights, and re-derive the
        # tile budget against v7x's 64 MiB VMEM.
        compiler_params=pltpu.CompilerParams(vmem_limit_bytes=32 * 1024 * 1024),
    )(*args)
    return out.reshape(S, B, E)


# ---- pure-JAX reference (mirrors torch semantics) for a sanity check ------
def encoder1d_reference(x, p):
    xn = _layernorm(x, p['ln1_w'], p['ln1_b'])
    qkv = xn @ p['w_in'].T + p['b_in']                       # (S, B, 3E)
    q, k, v = jnp.split(qkv, 3, axis=-1)

    def heads(t):                                            # -> (B, H, S, HD)
        return t.reshape(S, B, H, HD).transpose(1, 2, 0, 3)

    qh, kh, vh = heads(q), heads(k), heads(v)
    scores = jnp.einsum('bhqd,bhkd->bhqk', qh, kh) / math.sqrt(HD)
    pa = jax.nn.softmax(scores, axis=-1)
    o = jnp.einsum('bhqk,bhkd->bhqd', pa, vh)                # (B, H, S, HD)
    o = o.transpose(2, 0, 1, 3).reshape(S, B, E)
    attn = o @ p['w_out'].T + p['b_out']
    x2 = x + attn
    y = _layernorm(x2, p['ln2_w'], p['ln2_b'])
    h1 = _gelu(y @ p['fc1_w'].T + p['fc1_b'])
    mlp = h1 @ p['fc2_w'].T + p['fc2_b']
    return x2 + mlp


def init_params(key):
    ks = jax.random.split(key, 12)
    n = lambda k, shp, s=0.05: s * jax.random.normal(k, shp, jnp.float32)
    return {
        # LayerNorm 1 / 2 (weight, bias); stored as (1, E) for broadcasting
        'ln1_w': 1.0 + n(ks[0], (1, E), 0.1), 'ln1_b': n(ks[1], (1, E), 0.1),
        'ln2_w': 1.0 + n(ks[2], (1, E), 0.1), 'ln2_b': n(ks[3], (1, E), 0.1),
        # nn.MultiheadAttention: in_proj (3E,E)+(3E,), out_proj (E,E)+(E,)
        'w_in':  n(ks[4], (3 * E, E)), 'b_in':  n(ks[5], (1, 3 * E)),
        'w_out': n(ks[6], (E, E)),     'b_out': n(ks[7], (1, E)),
        # MlpBlock: fc1 (E,E)+(E,), fc2 (E,E)+(E,)  (mlp_dim == embedding_dim)
        'fc1_w': n(ks[8], (E, E)),     'fc1_b': n(ks[9], (1, E)),
        'fc2_w': n(ks[10], (E, E)),    'fc2_b': n(ks[11], (1, E)),
    }


if __name__ == "__main__":
    key = jax.random.PRNGKey(0)
    kx, kp = jax.random.split(key)
    x = jax.random.normal(kx, (S, B, E), jnp.float32)        # (seq, batch, embed)
    params = init_params(kp)
    prepared = jax.block_until_ready(prepare_params(params))  # one-time relayout

    out = encoder1d_block(x, prepared)
    out = jax.block_until_ready(out)

    ref = encoder1d_reference(x, params)                      # pure f32 reference
    assert out.shape == (S, B, E)
    assert jnp.all(jnp.isfinite(out))
    # bf16 matmul operands + approx reciprocal => not bit-exact vs f32 reference
    assert jnp.allclose(out, ref, atol=2e-2, rtol=2e-2), \
        f"max abs err {jnp.max(jnp.abs(out - ref))}"

    print("KERNEL_OK")
</pallas_src>

<mosaic_0001>
module attributes {stable_mosaic.version = 11 : i64} {
  func.func @encoder1d_kernel(%arg0: memref<16x32xf32, #tpu.memory_space<vmem>>, %arg1: memref<16x16xf32, #tpu.memory_space<vmem>>, %arg2: memref<1x32xf32, #tpu.memory_space<vmem>>, %arg3: memref<1x32xf32, #tpu.memory_space<vmem>>, %arg4: memref<32x96xbf16, #tpu.memory_space<vmem>>, %arg5: memref<1x96xf32, #tpu.memory_space<vmem>>, %arg6: memref<32x32xbf16, #tpu.memory_space<vmem>>, %arg7: memref<1x32xf32, #tpu.memory_space<vmem>>, %arg8: memref<1x32xf32, #tpu.memory_space<vmem>>, %arg9: memref<1x32xf32, #tpu.memory_space<vmem>>, %arg10: memref<32x32xbf16, #tpu.memory_space<vmem>>, %arg11: memref<1x32xf32, #tpu.memory_space<vmem>>, %arg12: memref<32x32xbf16, #tpu.memory_space<vmem>>, %arg13: memref<1x32xf32, #tpu.memory_space<vmem>>, %arg14: memref<16x32xf32, #tpu.memory_space<vmem>>) attributes {dimension_semantics = [], scalar_prefetch = 0 : i64, scratch_operands = 0 : i64, tpu.core_type = #tpu.core_type<tc>} {
    %c0 = arith.constant 0 : index
    %c0_0 = arith.constant 0 : index
    %0 = vector.load %arg0[%c0, %c0_0] : memref<16x32xf32, #tpu.memory_space<vmem>>, vector<16x32xf32>
    %c0_1 = arith.constant 0 : index
    %c0_2 = arith.constant 0 : index
    %1 = vector.load %arg2[%c0_1, %c0_2] : memref<1x32xf32, #tpu.memory_space<vmem>>, vector<1x32xf32>
    %c0_3 = arith.constant 0 : index
    %c0_4 = arith.constant 0 : index
    %2 = vector.load %arg3[%c0_3, %c0_4] : memref<1x32xf32, #tpu.memory_space<vmem>>, vector<1x32xf32>
    %cst = arith.constant dense<0.000000e+00> : vector<16xf32>
    %3 = vector.multi_reduction <add>, %0, %cst [1] : vector<16x32xf32> to vector<16xf32>
    %4 = vector.shape_cast %3 : vector<16xf32> to vector<16x1xf32>
    %cst_5 = arith.constant 3.200000e+01 : f32
    %5 = vector.broadcast %cst_5 : f32 to vector<16x1xf32>
    %6 = arith.divf %4, %5 : vector<16x1xf32>
    %7 = vector.broadcast %6 : vector<16x1xf32> to vector<16x32xf32>
    %8 = arith.subf %0, %7 : vector<16x32xf32>
    %9 = arith.mulf %8, %8 : vector<16x32xf32>
    %cst_6 = arith.constant dense<0.000000e+00> : vector<16xf32>
    %10 = vector.multi_reduction <add>, %9, %cst_6 [1] : vector<16x32xf32> to vector<16xf32>
    %11 = vector.shape_cast %10 : vector<16xf32> to vector<16x1xf32>
    %cst_7 = arith.constant 3.200000e+01 : f32
    %12 = vector.broadcast %cst_7 : f32 to vector<16x1xf32>
    %13 = arith.divf %11, %12 : vector<16x1xf32>
    %14 = vector.broadcast %6 : vector<16x1xf32> to vector<16x32xf32>
    %15 = arith.subf %0, %14 : vector<16x32xf32>
    %cst_8 = arith.constant 9.99999974E-6 : f32
    %16 = vector.broadcast %cst_8 : f32 to vector<16x1xf32>
    %17 = arith.addf %13, %16 : vector<16x1xf32>
    %18 = math.rsqrt %17 : vector<16x1xf32>
    %19 = vector.broadcast %18 : vector<16x1xf32> to vector<16x32xf32>
    %20 = arith.mulf %15, %19 : vector<16x32xf32>
    %21 = vector.broadcast %1 : vector<1x32xf32> to vector<16x32xf32>
    %22 = arith.mulf %20, %21 : vector<16x32xf32>
    %23 = vector.broadcast %2 : vector<1x32xf32> to vector<16x32xf32>
    %24 = arith.addf %22, %23 : vector<16x32xf32>
    %25 = arith.truncf %24 : vector<16x32xf32> to vector<16x32xbf16>
    %c0_9 = arith.constant 0 : index
    %c0_10 = arith.constant 0 : index
    %26 = vector.load %arg4[%c0_9, %c0_10] : memref<32x96xbf16, #tpu.memory_space<vmem>>, vector<32x96xbf16>
    %cst_11 = arith.constant dense<0.000000e+00> : vector<16x96xf32>
    %27 = tpu.matmul %25, %26, %cst_11 {dimension_numbers = #tpu.dot_dimension_numbers<[1], [0], [0], [1], [0, 0, 1, 1], [], []>} : vector<16x32xbf16>, vector<32x96xbf16>, vector<16x96xf32> -> vector<16x96xf32>
    %c0_12 = arith.constant 0 : index
    %c0_13 = arith.constant 0 : index
    %28 = vector.load %arg5[%c0_12, %c0_13] : memref<1x96xf32, #tpu.memory_space<vmem>>, vector<1x96xf32>
    %29 = vector.broadcast %28 : vector<1x96xf32> to vector<16x96xf32>
    %30 = arith.addf %27, %29 : vector<16x96xf32>
    %31 = vector.extract_strided_slice %30 {offsets = [0, 0], sizes = [16, 32], strides = [1, 1]} : vector<16x96xf32> to vector<16x32xf32>
    %32 = vector.extract_strided_slice %31 {offsets = [0, 0], sizes = [16, 8], strides = [1, 1]} : vector<16x32xf32> to vector<16x8xf32>
    %33 = vector.extract_strided_slice %31 {offsets = [0, 8], sizes = [16, 8], strides = [1, 1]} : vector<16x32xf32> to vector<16x8xf32>
    %34 = vector.extract_strided_slice %31 {offsets = [0, 16], sizes = [16, 8], strides = [1, 1]} : vector<16x32xf32> to vector<16x8xf32>
    %35 = vector.extract_strided_slice %31 {offsets = [0, 24], sizes = [16, 8], strides = [1, 1]} : vector<16x32xf32> to vector<16x8xf32>
    %36 = vector.shape_cast %32 : vector<16x8xf32> to vector<1x16x8xf32>
    %37 = vector.shape_cast %33 : vector<16x8xf32> to vector<1x16x8xf32>
    %38 = vector.shape_cast %34 : vector<16x8xf32> to vector<1x16x8xf32>
    %39 = vector.shape_cast %35 : vector<16x8xf32> to vector<1x16x8xf32>
    %40 = tpu.concatenate %36, %37, %38, %39 in 0 : vector<1x16x8xf32>, vector<1x16x8xf32>, vector<1x16x8xf32>, vector<1x16x8xf32> -> vector<4x16x8xf32>
    %41 = arith.truncf %40 : vector<4x16x8xf32> to vector<4x16x8xbf16>
    %42 = vector.extract_strided_slice %30 {offsets = [0, 32], sizes = [16, 32], strides = [1, 1]} : vector<16x96xf32> to vector<16x32xf32>
    %43 = vector.extract_strided_slice %42 {offsets = [0, 0], sizes = [16, 8], strides = [1, 1]} : vector<16x32xf32> to vector<16x8xf32>
    %44 = vector.extract_strided_slice %42 {offsets = [0, 8], sizes = [16, 8], strides = [1, 1]} : vector<16x32xf32> to vector<16x8xf32>
    %45 = vector.extract_strided_slice %42 {offsets = [0, 16], sizes = [16, 8], strides = [1, 1]} : vector<16x32xf32> to vector<16x8xf32>
    %46 = vector.extract_strided_slice %42 {offsets = [0, 24], sizes = [16, 8], strides = [1, 1]} : vector<16x32xf32> to vector<16x8xf32>
    %47 = vector.shape_cast %43 : vector<16x8xf32> to vector<1x16x8xf32>
    %48 = vector.shape_cast %44 : vector<16x8xf32> to vector<1x16x8xf32>
    %49 = vector.shape_cast %45 : vector<16x8xf32> to vector<1x16x8xf32>
    %50 = vector.shape_cast %46 : vector<16x8xf32> to vector<1x16x8xf32>
    %51 = tpu.concatenate %47, %48, %49, %50 in 0 : vector<1x16x8xf32>, vector<1x16x8xf32>, vector<1x16x8xf32>, vector<1x16x8xf32> -> vector<4x16x8xf32>
    %52 = arith.truncf %51 : vector<4x16x8xf32> to vector<4x16x8xbf16>
    %53 = vector.extract_strided_slice %30 {offsets = [0, 64], sizes = [16, 32], strides = [1, 1]} : vector<16x96xf32> to vector<16x32xf32>
    %54 = vector.extract_strided_slice %53 {offsets = [0, 0], sizes = [16, 8], strides = [1, 1]} : vector<16x32xf32> to vector<16x8xf32>
    %55 = vector.extract_strided_slice %53 {offsets = [0, 8], sizes = [16, 8], strides = [1, 1]} : vector<16x32xf32> to vector<16x8xf32>
    %56 = vector.extract_strided_slice %53 {offsets = [0, 16], sizes = [16, 8], strides = [1, 1]} : vector<16x32xf32> to vector<16x8xf32>
    %57 = vector.extract_strided_slice %53 {offsets = [0, 24], sizes = [16, 8], strides = [1, 1]} : vector<16x32xf32> to vector<16x8xf32>
    %58 = vector.shape_cast %54 : vector<16x8xf32> to vector<1x16x8xf32>
    %59 = vector.shape_cast %55 : vector<16x8xf32> to vector<1x16x8xf32>
    %60 = vector.shape_cast %56 : vector<16x8xf32> to vector<1x16x8xf32>
    %61 = vector.shape_cast %57 : vector<16x8xf32> to vector<1x16x8xf32>
    %62 = tpu.concatenate %58, %59, %60, %61 in 0 : vector<1x16x8xf32>, vector<1x16x8xf32>, vector<1x16x8xf32>, vector<1x16x8xf32> -> vector<4x16x8xf32>
    %63 = arith.truncf %62 : vector<4x16x8xf32> to vector<4x16x8xbf16>
    "tpu.trace_start"() <{level = 10 : i32, message = "hqd,hkd->hqk"}> : () -> ()
    %cst_14 = arith.constant dense<0.000000e+00> : vector<4x16x16xf32>
    %64 = tpu.matmul %41, %52, %cst_14 {dimension_numbers = #tpu.dot_dimension_numbers<[2], [2], [1], [1], [0, 0, 0, 1, 1, 1], [0], [0]>} : vector<4x16x8xbf16>, vector<4x16x8xbf16>, vector<4x16x16xf32> -> vector<4x16x16xf32>
    "tpu.trace_stop"() : () -> ()
    %cst_15 = arith.constant 0.353553385 : f32
    %65 = vector.broadcast %cst_15 : f32 to vector<4x16x16xf32>
    %66 = arith.mulf %64, %65 : vector<4x16x16xf32>
    %c0_16 = arith.constant 0 : index
    %c0_17 = arith.constant 0 : index
    %67 = vector.load %arg1[%c0_16, %c0_17] : memref<16x16xf32, #tpu.memory_space<vmem>>, vector<16x16xf32>
    %68 = vector.shape_cast %67 : vector<16x16xf32> to vector<1x16x16xf32>
    %69 = vector.broadcast %68 : vector<1x16x16xf32> to vector<4x16x16xf32>
    %70 = arith.addf %66, %69 : vector<4x16x16xf32>
    %cst_18 = arith.constant dense<0xFF800000> : vector<4x16xf32>
    %71 = vector.multi_reduction <maximumf>, %70, %cst_18 [2] : vector<4x16x16xf32> to vector<4x16xf32>
    %72 = vector.shape_cast %71 : vector<4x16xf32> to vector<4x16x1xf32>
    %73 = vector.broadcast %72 : vector<4x16x1xf32> to vector<4x16x16xf32>
    %74 = arith.subf %70, %73 : vector<4x16x16xf32>
    %75 = math.exp %74 : vector<4x16x16xf32>
    %cst_19 = arith.constant dense<0.000000e+00> : vector<4x16xf32>
    %76 = vector.multi_reduction <add>, %75, %cst_19 [2] : vector<4x16x16xf32> to vector<4x16xf32>
    %77 = vector.shape_cast %76 : vector<4x16xf32> to vector<4x16x1xf32>
    %78 = tpu.reciprocal %77 {approx = true} : vector<4x16x1xf32> -> vector<4x16x1xf32>
    %79 = vector.broadcast %78 : vector<4x16x1xf32> to vector<4x16x16xf32>
    %80 = arith.mulf %75, %79 : vector<4x16x16xf32>
    %81 = arith.truncf %80 : vector<4x16x16xf32> to vector<4x16x16xbf16>
    "tpu.trace_start"() <{level = 10 : i32, message = "hqk,hkd->hqd"}> : () -> ()
    %cst_20 = arith.constant dense<0.000000e+00> : vector<4x16x8xf32>
    %82 = tpu.matmul %81, %63, %cst_20 {dimension_numbers = #tpu.dot_dimension_numbers<[2], [1], [1], [2], [0, 0, 0, 1, 1, 2], [0], [0]>} : vector<4x16x16xbf16>, vector<4x16x8xbf16>, vector<4x16x8xf32> -> vector<4x16x8xf32>
    "tpu.trace_stop"() : () -> ()
    %83 = vector.extract_strided_slice %82 {offsets = [0, 0, 0], sizes = [1, 16, 8], strides = [1, 1, 1]} : vector<4x16x8xf32> to vector<1x16x8xf32>
    %84 = vector.shape_cast %83 : vector<1x16x8xf32> to vector<16x8xf32>
    %85 = vector.extract_strided_slice %82 {offsets = [1, 0, 0], sizes = [1, 16, 8], strides = [1, 1, 1]} : vector<4x16x8xf32> to vector<1x16x8xf32>
    %86 = vector.shape_cast %85 : vector<1x16x8xf32> to vector<16x8xf32>
    %87 = vector.extract_strided_slice %82 {offsets = [2, 0, 0], sizes = [1, 16, 8], strides = [1, 1, 1]} : vector<4x16x8xf32> to vector<1x16x8xf32>
    %88 = vector.shape_cast %87 : vector<1x16x8xf32> to vector<16x8xf32>
    %89 = vector.extract_strided_slice %82 {offsets = [3, 0, 0], sizes = [1, 16, 8], strides = [1, 1, 1]} : vector<4x16x8xf32> to vector<1x16x8xf32>
    %90 = vector.shape_cast %89 : vector<1x16x8xf32> to vector<16x8xf32>
    %91 = tpu.concatenate %84, %86, %88, %90 in 1 : vector<16x8xf32>, vector<16x8xf32>, vector<16x8xf32>, vector<16x8xf32> -> vector<16x32xf32>
    %92 = arith.truncf %91 : vector<16x32xf32> to vector<16x32xbf16>
    %c0_21 = arith.constant 0 : index
    %c0_22 = arith.constant 0 : index
    %93 = vector.load %arg6[%c0_21, %c0_22] : memref<32x32xbf16, #tpu.memory_space<vmem>>, vector<32x32xbf16>
    %cst_23 = arith.constant dense<0.000000e+00> : vector<16x32xf32>
    %94 = tpu.matmul %92, %93, %cst_23 {dimension_numbers = #tpu.dot_dimension_numbers<[1], [0], [0], [1], [0, 0, 1, 1], [], []>} : vector<16x32xbf16>, vector<32x32xbf16>, vector<16x32xf32> -> vector<16x32xf32>
    %c0_24 = arith.constant 0 : index
    %c0_25 = arith.constant 0 : index
    %95 = vector.load %arg7[%c0_24, %c0_25] : memref<1x32xf32, #tpu.memory_space<vmem>>, vector<1x32xf32>
    %96 = vector.broadcast %95 : vector<1x32xf32> to vector<16x32xf32>
    %97 = arith.addf %94, %96 : vector<16x32xf32>
    %98 = arith.addf %0, %97 : vector<16x32xf32>
    %c0_26 = arith.constant 0 : index
    %c0_27 = arith.constant 0 : index
    %99 = vector.load %arg8[%c0_26, %c0_27] : memref<1x32xf32, #tpu.memory_space<vmem>>, vector<1x32xf32>
    %c0_28 = arith.constant 0 : index
    %c0_29 = arith.constant 0 : index
    %100 = vector.load %arg9[%c0_28, %c0_29] : memref<1x32xf32, #tpu.memory_space<vmem>>, vector<1x32xf32>
    %cst_30 = arith.constant dense<0.000000e+00> : vector<16xf32>
    %101 = vector.multi_reduction <add>, %98, %cst_30 [1] : vector<16x32xf32> to vector<16xf32>
    %102 = vector.shape_cast %101 : vector<16xf32> to vector<16x1xf32>
    %cst_31 = arith.constant 3.200000e+01 : f32
    %103 = vector.broadcast %cst_31 : f32 to vector<16x1xf32>
    %104 = arith.divf %102, %103 : vector<16x1xf32>
    %105 = vector.broadcast %104 : vector<16x1xf32> to vector<16x32xf32>
    %106 = arith.subf %98, %105 : vector<16x32xf32>
    %107 = arith.mulf %106, %106 : vector<16x32xf32>
    %cst_32 = arith.constant dense<0.000000e+00> : vector<16xf32>
    %108 = vector.multi_reduction <add>, %107, %cst_32 [1] : vector<16x32xf32> to vector<16xf32>
    %109 = vector.shape_cast %108 : vector<16xf32> to vector<16x1xf32>
    %cst_33 = arith.constant 3.200000e+01 : f32
    %110 = vector.broadcast %cst_33 : f32 to vector<16x1xf32>
    %111 = arith.divf %109, %110 : vector<16x1xf32>
    %112 = vector.broadcast %104 : vector<16x1xf32> to vector<16x32xf32>
    %113 = arith.subf %98, %112 : vector<16x32xf32>
    %cst_34 = arith.constant 9.99999974E-6 : f32
    %114 = vector.broadcast %cst_34 : f32 to vector<16x1xf32>
    %115 = arith.addf %111, %114 : vector<16x1xf32>
    %116 = math.rsqrt %115 : vector<16x1xf32>
    %117 = vector.broadcast %116 : vector<16x1xf32> to vector<16x32xf32>
    %118 = arith.mulf %113, %117 : vector<16x32xf32>
    %119 = vector.broadcast %99 : vector<1x32xf32> to vector<16x32xf32>
    %120 = arith.mulf %118, %119 : vector<16x32xf32>
    %121 = vector.broadcast %100 : vector<1x32xf32> to vector<16x32xf32>
    %122 = arith.addf %120, %121 : vector<16x32xf32>
    %123 = arith.truncf %122 : vector<16x32xf32> to vector<16x32xbf16>
    %c0_35 = arith.constant 0 : index
    %c0_36 = arith.constant 0 : index
    %124 = vector.load %arg10[%c0_35, %c0_36] : memref<32x32xbf16, #tpu.memory_space<vmem>>, vector<32x32xbf16>
    %cst_37 = arith.constant dense<0.000000e+00> : vector<16x32xf32>
    %125 = tpu.matmul %123, %124, %cst_37 {dimension_numbers = #tpu.dot_dimension_numbers<[1], [0], [0], [1], [0, 0, 1, 1], [], []>} : vector<16x32xbf16>, vector<32x32xbf16>, vector<16x32xf32> -> vector<16x32xf32>
    %c0_38 = arith.constant 0 : index
    %c0_39 = arith.constant 0 : index
    %126 = vector.load %arg11[%c0_38, %c0_39] : memref<1x32xf32, #tpu.memory_space<vmem>>, vector<1x32xf32>
    %127 = vector.broadcast %126 : vector<1x32xf32> to vector<16x32xf32>
    %128 = arith.addf %125, %127 : vector<16x32xf32>
    %cst_40 = arith.constant 5.000000e-01 : f32
    %129 = vector.broadcast %cst_40 : f32 to vector<16x32xf32>
    %130 = arith.mulf %129, %128 : vector<16x32xf32>
    %cst_41 = arith.constant 0.707106769 : f32
    %131 = vector.broadcast %cst_41 : f32 to vector<16x32xf32>
    %132 = arith.mulf %128, %131 : vector<16x32xf32>
    %133 = math.erf %132 : vector<16x32xf32>
    %cst_42 = arith.constant 1.000000e+00 : f32
    %134 = vector.broadcast %cst_42 : f32 to vector<16x32xf32>
    %135 = arith.addf %134, %133 : vector<16x32xf32>
    %136 = arith.mulf %130, %135 : vector<16x32xf32>
    %137 = arith.truncf %136 : vector<16x32xf32> to vector<16x32xbf16>
    %c0_43 = arith.constant 0 : index
    %c0_44 = arith.constant 0 : index
    %138 = vector.load %arg12[%c0_43, %c0_44] : memref<32x32xbf16, #tpu.memory_space<vmem>>, vector<32x32xbf16>
    %cst_45 = arith.constant dense<0.000000e+00> : vector<16x32xf32>
    %139 = tpu.matmul %137, %138, %cst_45 {dimension_numbers = #tpu.dot_dimension_numbers<[1], [0], [0], [1], [0, 0, 1, 1], [], []>} : vector<16x32xbf16>, vector<32x32xbf16>, vector<16x32xf32> -> vector<16x32xf32>
    %c0_46 = arith.constant 0 : index
    %c0_47 = arith.constant 0 : index
    %140 = vector.load %arg13[%c0_46, %c0_47] : memref<1x32xf32, #tpu.memory_space<vmem>>, vector<1x32xf32>
    %141 = vector.broadcast %140 : vector<1x32xf32> to vector<16x32xf32>
    %142 = arith.addf %139, %141 : vector<16x32xf32>
    %143 = arith.addf %98, %142 : vector<16x32xf32>
    %c0_48 = arith.constant 0 : index
    %c0_49 = arith.constant 0 : index
    %144 = vector.load %arg14[%c0_48, %c0_49] : memref<16x32xf32, #tpu.memory_space<vmem>>, vector<16x32xf32>
    tpu.vector_store %arg14[%c0_48, %c0_49], %143 {strides = array<i32>} : memref<16x32xf32, #tpu.memory_space<vmem>>, vector<16x32xf32>,
    return
  }
}

</mosaic_0001>

<llo_original>
// kernel: tpu_custom_call.1
$region0: #{tpu_custom_call.1}
  #allocation0 [shape = 'u32[]', space=smem, size = 0x4, offset = 0x4, fixed_abs, tag = 'smem constant byte address 0x4 - core index']
  #allocation1 [shape = 'u32[144,128]{1,0:T(1,128)}', space=vmem, size = 0x12000, scoped, tag = 'internal scratch']
  %s0 = inlined_call_operand.hbm [shape: f32[16,32], index: 0, kind: input, shape index: {}]
  %s1 = inlined_call_operand.hbm [shape: f32[16,16], index: 1, kind: input, shape index: {}]
  %s2 = inlined_call_operand.vmem [shape: f32[1,32], index: 2, kind: input, shape index: {}]
  %s3 = inlined_call_operand.vmem [shape: f32[1,32], index: 3, kind: input, shape index: {}]
  %s4 = inlined_call_operand.hbm [shape: bf16[32,96], index: 4, kind: input, shape index: {}]
  %s5 = inlined_call_operand.hbm [shape: f32[1,96], index: 5, kind: input, shape index: {}]
  %s6 = inlined_call_operand.vmem [shape: bf16[32,32], index: 6, kind: input, shape index: {}]
  %s7 = inlined_call_operand.hbm [shape: f32[1,32], index: 7, kind: input, shape index: {}]
  %s8 = inlined_call_operand.hbm [shape: f32[1,32], index: 8, kind: input, shape index: {}]
  %s9 = inlined_call_operand.hbm [shape: f32[1,32], index: 9, kind: input, shape index: {}]
  %s10 = inlined_call_operand.vmem [shape: bf16[32,32], index: 10, kind: input, shape index: {}]
  %s11 = inlined_call_operand.vmem [shape: f32[1,32], index: 11, kind: input, shape index: {}]
  %s12 = inlined_call_operand.hbm [shape: bf16[32,32], index: 12, kind: input, shape index: {}]
  %s13 = inlined_call_operand.vmem [shape: f32[1,32], index: 13, kind: input, shape index: {}]
  %s14 = inlined_call_operand.hbm [shape: f32[16,32], index: 14, kind: output, shape index: {}]
  %s15 = sld [smem:[#allocation0]]
  $region98: #{tpu_custom_call.1} parent=0
    _
  %s17 = ssub.s32 1, %s15
  %s18 = scalar_select 0, %s17, %s15
  $region1: #{tpu_custom_call.1} parent=0
    #allocation2 [shape = 'u8[8192]{0}', space=vmem, size = 0x2000, scoped, tag = 'input window, operand 0, single buffered']
    #allocation3 [shape = 's32[1]{0}', space=sflag, size = 0x4, scoped, tag = 'scoped memory for tpu_custom_call.1']
    #allocation4 [shape = 's32[1]{0}', space=sflag, size = 0x4, scoped, tag = 'scoped memory for tpu_custom_call.1']
    #allocation5 [shape = 'u8[8192]{0}', space=vmem, size = 0x2000, scoped, tag = 'input window, operand 1, single buffered']
    #allocation6 [shape = 's32[1]{0}', space=sflag, size = 0x4, scoped, tag = 'scoped memory for tpu_custom_call.1']
    #allocation7 [shape = 'u8[8192]{0}', space=vmem, size = 0x2000, scoped, tag = 'input window, operand 4, single buffered']
    #allocation8 [shape = 'u8[512]{0}', space=vmem, size = 0x400, scoped, tag = 'input window, operand 5, single buffered']
    #allocation9 [shape = 's32[1]{0}', space=sflag, size = 0x4, scoped, tag = 'scoped memory for tpu_custom_call.1']
    #allocation10 [shape = 'u8[512]{0}', space=vmem, size = 0x400, scoped, tag = 'input window, operand 7, single buffered']
    #allocation11 [shape = 'u8[512]{0}', space=vmem, size = 0x400, scoped, tag = 'input window, operand 8, single buffered']
    #allocation12 [shape = 's32[1]{0}', space=sflag, size = 0x4, scoped, tag = 'scoped memory for tpu_custom_call.1']
    #allocation13 [shape = 'u8[512]{0}', space=vmem, size = 0x400, scoped, tag = 'input window, operand 9, single buffered']
    #allocation14 [shape = 'u8[8192]{0}', space=vmem, size = 0x2000, scoped, tag = 'input window, operand 12, single buffered']
    #allocation15 [shape = 's32[1]{0}', space=sflag, size = 0x4, scoped, tag = 'scoped memory for tpu_custom_call.1']
    #allocation16 [shape = 'u8[8192]{0}', space=vmem, size = 0x2000, scoped, tag = 'output window, operand 0, single buffered']
    %19 = vsyncpa [#allocation3], 0
    %20 = vsyncpa [#allocation6], 0
    %21 = vsyncpa [#allocation9], 0
    %22 = vsyncpa [#allocation12], 0
    %23 = vsyncpa [#allocation15], 0
    %24 = vsyncpa [#allocation4], 0
    // Predicated region
    $region2: #{tpu_custom_call.1} parent=1 // pred_check
      _
    $region3: #{tpu_custom_call.1} parent=1 // pred_check_branch
      %26 = sbr.rel (0) target = $region5
    $region4: #{tpu_custom_call.1} parent=1 // pred_region
      %s28 = ssub.s32 256, 256
      %29 = vsyncadd [#allocation3], %s28
      %s30 = sshll.u32 [#allocation2], 4
      %s31 = int_to_ptr.vmem [resolvable:$true] %s30
      %36 = dma.hbm_to_vmem [thread:$0]  %s0, 256, %s31, [#allocation3], 128, 128, 8
    $region5: #{tpu_custom_call.1} parent=1 // pred_fallthru
      _
    // Predicated region
    $region6: #{tpu_custom_call.1} parent=1 // pred_check
      _
    $region7: #{tpu_custom_call.1} parent=1 // pred_check_branch
      %38 = sbr.rel (0) target = $region9
    $region8: #{tpu_custom_call.1} parent=1 // pred_region
      %s40 = ssub.s32 256, 256
      %41 = vsyncadd [#allocation6], %s40
      %s42 = sshll.u32 [#allocation5], 4
      %s43 = int_to_ptr.vmem [resolvable:$true] %s42
      %48 = dma.hbm_to_vmem [thread:$0]  %s1, 256, %s43, [#allocation6], 128, 128, 8
    $region9: #{tpu_custom_call.1} parent=1 // pred_fallthru
      _
    // Predicated region
    $region10: #{tpu_custom_call.1} parent=1 // pred_check
      _
    $region11: #{tpu_custom_call.1} parent=1 // pred_check_branch
      %50 = sbr.rel (0) target = $region13
    $region12: #{tpu_custom_call.1} parent=1 // pred_region
      _
    $region13: #{tpu_custom_call.1} parent=1 // pred_fallthru
      _
    // Predicated region
    $region14: #{tpu_custom_call.1} parent=1 // pred_check
      _
    $region15: #{tpu_custom_call.1} parent=1 // pred_check_branch
      %52 = sbr.rel (0) target = $region17
    $region16: #{tpu_custom_call.1} parent=1 // pred_region
      _
    $region17: #{tpu_custom_call.1} parent=1 // pred_fallthru
      _
    // Predicated region
    $region18: #{tpu_custom_call.1} parent=1 // pred_check
      _
    $region19: #{tpu_custom_call.1} parent=1 // pred_check_branch
      %54 = sbr.rel (0) target = $region21
    $region20: #{tpu_custom_call.1} parent=1 // pred_region
      %s56 = ssub.s32 256, 256
      %57 = vsyncadd [#allocation6], %s56
      %s58 = sshll.u32 [#allocation7], 4
      %s59 = int_to_ptr.vmem [resolvable:$true] %s58
      %64 = dma.hbm_to_vmem [thread:$0]  %s4, 256, %s59, [#allocation6], 64, 64, 4
    $region21: #{tpu_custom_call.1} parent=1 // pred_fallthru
      _
    // Predicated region
    $region22: #{tpu_custom_call.1} parent=1 // pred_check
      _
    $region23: #{tpu_custom_call.1} parent=1 // pred_check_branch
      %66 = sbr.rel (0) target = $region25
    $region24: #{tpu_custom_call.1} parent=1 // pred_region
      %s68 = ssub.s32 16, 16
      %69 = vsyncadd [#allocation9], %s68
      %s71 = sshll.u32 [#allocation8], 4
      %s72 = int_to_ptr.vmem [resolvable:$true] %s71
      %74 = dma.hbm_to_vmem [thread:$0]  %s5, 16, %s72, [#allocation9]
    $region25: #{tpu_custom_call.1} parent=1 // pred_fallthru
      _
    // Predicated region
    $region26: #{tpu_custom_call.1} parent=1 // pred_check
      _
    $region27: #{tpu_custom_call.1} parent=1 // pred_check_branch
      %76 = sbr.rel (0) target = $region29
    $region28: #{tpu_custom_call.1} parent=1 // pred_region
      _
    $region29: #{tpu_custom_call.1} parent=1 // pred_fallthru
      _
    // Predicated region
    $region30: #{tpu_custom_call.1} parent=1 // pred_check
      _
    $region31: #{tpu_custom_call.1} parent=1 // pred_check_branch
      %78 = sbr.rel (0) target = $region33
    $region32: #{tpu_custom_call.1} parent=1 // pred_region
      %s80 = ssub.s32 16, 16
      %81 = vsyncadd [#allocation9], %s80
      %s83 = sshll.u32 [#allocation10], 4
      %s84 = int_to_ptr.vmem [resolvable:$true] %s83
      %86 = dma.hbm_to_vmem [thread:$0]  %s7, 16, %s84, [#allocation9]
    $region33: #{tpu_custom_call.1} parent=1 // pred_fallthru
      _
    // Predicated region
    $region34: #{tpu_custom_call.1} parent=1 // pred_check
      _
    $region35: #{tpu_custom_call.1} parent=1 // pred_check_branch
      %88 = sbr.rel (0) target = $region37
    $region36: #{tpu_custom_call.1} parent=1 // pred_region
      %s90 = ssub.s32 16, 16
      %91 = vsyncadd [#allocation12], %s90
      %s93 = sshll.u32 [#allocation11], 4
      %s94 = int_to_ptr.vmem [resolvable:$true] %s93
      %96 = dma.hbm_to_vmem [thread:$0]  %s8, 16, %s94, [#allocation12]
    $region37: #{tpu_custom_call.1} parent=1 // pred_fallthru
      _
    // Predicated region
    $region38: #{tpu_custom_call.1} parent=1 // pred_check
      _
    $region39: #{tpu_custom_call.1} parent=1 // pred_check_branch
      %98 = sbr.rel (0) target = $region41
    $region40: #{tpu_custom_call.1} parent=1 // pred_region
      %s100 = ssub.s32 16, 16
      %101 = vsyncadd [#allocation12], %s100
      %s103 = sshll.u32 [#allocation13], 4
      %s104 = int_to_ptr.vmem [resolvable:$true] %s103
      %106 = dma.hbm_to_vmem [thread:$0]  %s9, 16, %s104, [#allocation12]
    $region41: #{tpu_custom_call.1} parent=1 // pred_fallthru
      _
    // Predicated region
    $region42: #{tpu_custom_call.1} parent=1 // pred_check
      _
    $region43: #{tpu_custom_call.1} parent=1 // pred_check_branch
      %108 = sbr.rel (0) target = $region45
    $region44: #{tpu_custom_call.1} parent=1 // pred_region
      _
    $region45: #{tpu_custom_call.1} parent=1 // pred_fallthru
      _
    // Predicated region
    $region46: #{tpu_custom_call.1} parent=1 // pred_check
      _
    $region47: #{tpu_custom_call.1} parent=1 // pred_check_branch
      %110 = sbr.rel (0) target = $region49
    $region48: #{tpu_custom_call.1} parent=1 // pred_region
      _
    $region49: #{tpu_custom_call.1} parent=1 // pred_fallthru
      _
    // Predicated region
    $region50: #{tpu_custom_call.1} parent=1 // pred_check
      _
    $region51: #{tpu_custom_call.1} parent=1 // pred_check_branch
      %112 = sbr.rel (0) target = $region53
    $region52: #{tpu_custom_call.1} parent=1 // pred_region
      %s114 = ssub.s32 256, 256
      %115 = vsyncadd [#allocation15], %s114
      %s116 = sshll.u32 [#allocation14], 4
      %s117 = int_to_ptr.vmem [resolvable:$true] %s116
      %122 = dma.hbm_to_vmem [thread:$0]  %s12, 256, %s117, [#allocation15], 64, 64, 4
    $region53: #{tpu_custom_call.1} parent=1 // pred_fallthru
      _
    // Predicated region
    $region54: #{tpu_custom_call.1} parent=1 // pred_check
      _
    $region55: #{tpu_custom_call.1} parent=1 // pred_check_branch
      %124 = sbr.rel (0) target = $region57
    $region56: #{tpu_custom_call.1} parent=1 // pred_region
      _
    $region57: #{tpu_custom_call.1} parent=1 // pred_fallthru
      _
    // Predicated region
    $region58: #{tpu_custom_call.1} parent=1 // pred_check
      _
    $region59: #{tpu_custom_call.1} parent=1 // pred_check_branch
      %126 = sbr.rel (0) target = $region61
    $region60: #{tpu_custom_call.1} parent=1 // pred_region
      %127 = dma.done [#allocation3], 256
    $region61: #{tpu_custom_call.1} parent=1 // pred_fallthru
      _
    // Predicated region
    $region62: #{tpu_custom_call.1} parent=1 // pred_check
      _
    $region63: #{tpu_custom_call.1} parent=1 // pred_check_branch
      %129 = sbr.rel (0) target = $region65
    $region64: #{tpu_custom_call.1} parent=1 // pred_region
      %130 = dma.done [#allocation6], 256
    $region65: #{tpu_custom_call.1} parent=1 // pred_fallthru
      _
    // Predicated region
    $region66: #{tpu_custom_call.1} parent=1 // pred_check
      _
    $region67: #{tpu_custom_call.1} parent=1 // pred_check_branch
      %132 = sbr.rel (0) target = $region69
    $region68: #{tpu_custom_call.1} parent=1 // pred_region
      %133 = dma.done [#allocation6], 256
    $region69: #{tpu_custom_call.1} parent=1 // pred_fallthru
      _
    // Predicated region
    $region70: #{tpu_custom_call.1} parent=1 // pred_check
      _
    $region71: #{tpu_custom_call.1} parent=1 // pred_check_branch
      %135 = sbr.rel (0) target = $region73
    $region72: #{tpu_custom_call.1} parent=1 // pred_region
      %136 = dma.done [#allocation9], 16
    $region73: #{tpu_custom_call.1} parent=1 // pred_fallthru
      _
    // Predicated region
    $region74: #{tpu_custom_call.1} parent=1 // pred_check
      _
    $region75: #{tpu_custom_call.1} parent=1 // pred_check_branch
      %138 = sbr.rel (0) target = $region77
    $region76: #{tpu_custom_call.1} parent=1 // pred_region
      %139 = dma.done [#allocation9], 16
    $region77: #{tpu_custom_call.1} parent=1 // pred_fallthru
      _
    // Predicated region
    $region78: #{tpu_custom_call.1} parent=1 // pred_check
      _
    $region79: #{tpu_custom_call.1} parent=1 // pred_check_branch
      %141 = sbr.rel (0) target = $region81
    $region80: #{tpu_custom_call.1} parent=1 // pred_region
      %142 = dma.done [#allocation12], 16
    $region81: #{tpu_custom_call.1} parent=1 // pred_fallthru
      _
    // Predicated region
    $region82: #{tpu_custom_call.1} parent=1 // pred_check
      _
    $region83: #{tpu_custom_call.1} parent=1 // pred_check_branch
      %144 = sbr.rel (0) target = $region85
    $region84: #{tpu_custom_call.1} parent=1 // pred_region
      %145 = dma.done [#allocation12], 16
    $region85: #{tpu_custom_call.1} parent=1 // pred_fallthru
      _
    // Predicated region
    $region86: #{tpu_custom_call.1} parent=1 // pred_check
      _
    $region87: #{tpu_custom_call.1} parent=1 // pred_check_branch
      %147 = sbr.rel (0) target = $region89
    $region88: #{tpu_custom_call.1} parent=1 // pred_region
      %148 = dma.done [#allocation15], 256
    $region89: #{tpu_custom_call.1} parent=1 // pred_fallthru
      _
    %v150 = vld [vmem:[#allocation2] sm:$0xff]
    %v151 = vld [vmem:[#allocation2 + $0x8] sm:$0xff]
    %v152 = vld [vmem:[%s2] sm:$0x1]
    %v153 = vld [vmem:[%s3] sm:$0x1]
    %vm154 = vcmask 261120
    %v155 = vsel %vm154, %v150, 0.0
    %156 = vadd.xlane.f32.xlu0 %v155
    %v157 = vpop.xlane.xlu0 %156
    %v158 = vsel %vm154, %v151, 0.0
    %159 = vadd.xlane.f32.xlu0 %v158
    %v160 = vpop.xlane.xlu0 %159
    %v161 = vrcp.pop 32.0
    %v162 = vmul.f32 %v157, %v161
    %v163 = vmul.f32 %v160, %v161
    %v164 = vsub.f32 %v150, %v162
    %v165 = vsub.f32 %v151, %v163
    %v166 = vmul.f32 %v164, %v164
    %v167 = vmul.f32 %v165, %v165
    %v168 = vsel %vm154, %v166, 0.0
    %169 = vadd.xlane.f32.xlu0 %v168
    %v170 = vpop.xlane.xlu0 %169
    %v171 = vsel %vm154, %v167, 0.0
    %172 = vadd.xlane.f32.xlu0 %v171
    %v173 = vpop.xlane.xlu0 %172
    %v174 = vmul.f32 %v170, %v161
    %v175 = vmul.f32 %v173, %v161
    %v176 = vadd.f32 %v174, 1e-05
    %v177 = vadd.f32 %v175, 1e-05
    %v178 = vrsqrt.pop %v176
    %v179 = vrsqrt.pop %v177
    %v180 = vmul.f32 %v164, %v178
    %v181 = vmul.f32 %v165, %v179
    %v183 = vlaneseq
    %v184 = vshrl.u32 %v183, 7
    %v185 = vsub.s32 0, %v184
    %v186 = vrot.slane %v152, %v185
    %v188 = vmul.f32 %v180, %v186
    %v189 = vmul.f32 %v181, %v186
    %v191 = vlaneseq
    %v192 = vshrl.u32 %v191, 7
    %v193 = vsub.s32 0, %v192
    %v194 = vrot.slane %v153, %v193
    %v196 = vadd.f32 %v188, %v194
    %v197 = vadd.f32 %v189, %v194
    %v198 = vpack.c.bf16 %v197, %v196
    %v199 = vld [vmem:[#allocation7] sm:$0xf]
    %v200 = vld [vmem:[#allocation7 + $0x4] sm:$0xf]
    %v201 = vld [vmem:[#allocation7 + $0x8] sm:$0xf]
    %v202 = vld [vmem:[#allocation7 + $0xc] sm:$0xf]
    %v203 = vld [vmem:[#allocation8] sm:$0x1]
    %v205 = vlaneseq
    %v206 = vshrl.u32 %v205, 7
    %v207 = vsub.s32 0, %v206
    %v208 = vrot.slane %v203, %v207
    %v214 = vunpack.c.l.b16 %v199
    %v215 = vunpack.c.l.b16 %v200
    %v216 = vunpack.c.l.b16 %v201
    %v217 = vunpack.c.l.b16 %v202
    %v218 = vpack.c.b16 %v215, %v214
    %v219 = vpack.c.b16 %v217, %v216
    %v223 = vsel %vm154, %v198, 0
    %225 = vmatprep.subr.bf16.mxu0 0
    %226 = vmatpush1.bf16.msra.mxu0 %v218
    %227 = vmatprep.subr.bf16.mxu0 0
    %228 = vmatpush1.bf16.msra.mxu0 %v219
    %229 = vmatprep.subr.bf16.mxu0 0
    %230 = vmatpush1.bf16.msra.mxu0 0
    %231 = vmatprep.subr.bf16.mxu0 0
    %232 = vmatpush1.bf16.msra.mxu0 0
    %233 = vmatprep.subr.bf16.mxu0 0
    %234 = vmatpush1.bf16.msra.mxu0 0
    %235 = vmatprep.subr.bf16.mxu0 0
    %236 = vmatpush1.bf16.msra.mxu0 0
    %237 = vmatprep.subr.bf16.mxu0 0
    %238 = vmatpush1.bf16.msra.mxu0 0
    %239 = vmatprep.subr.bf16.mxu0 0
    %240 = vmatpush1.bf16.msra.mxu0 0
    %241 = vmatprep.subr.bf16.mxu0 0
    %242 = vmatpush1.bf16.msra.mxu0 0
    %243 = vmatprep.subr.bf16.mxu0 0
    %244 = vmatpush1.bf16.msra.mxu0 0
    %245 = vmatprep.subr.bf16.mxu0 0
    %246 = vmatpush1.bf16.msra.mxu0 0
    %247 = vmatprep.subr.bf16.mxu0 0
    %248 = vmatpush1.bf16.msra.mxu0 0
    %249 = vmatprep.subr.bf16.mxu0 0
    %250 = vmatpush1.bf16.msra.mxu0 0
    %251 = vmatprep.subr.bf16.mxu0 0
    %252 = vmatpush1.bf16.msra.mxu0 0
    %253 = vmatprep.subr.bf16.mxu0 0
    %254 = vmatpush1.bf16.msra.mxu0 0
    %255 = vmatprep.subr.bf16.mxu0 0
    %256 = vmatpush1.bf16.msra.mxu0 0
    %257 = vmatprep.mubr.bf16.mxu0 0
    %258 = vmatmul.mubr.bf16.gmra.mrb[0].mxu0 %v223
    %v259 = vpop.f32.mrb[0].mxu0
    %v260 = vadd.f32 %v208, %v259
    %v261 = vpop.f32.mrb[0].mxu0
    %v262 = vpop.f32.mrb[0].mxu0
    %v263 = vadd.f32 %v208, %v262
    %v264 = vpop.f32.mrb[0].mxu0
    %265 = vdwg.mxu0
    %268 = vrot.lane.b32.xlu0 %v260, 120
    %v269 = vpop.permute.xlu0 %268
    %270 = vrot.lane.b32.xlu0 %v263, 120
    %v271 = vpop.permute.xlu0 %270
    %274 = vrot.lane.b32.xlu0 %v260, 112
    %v275 = vpop.permute.xlu0 %274
    %276 = vrot.lane.b32.xlu0 %v263, 112
    %v277 = vpop.permute.xlu0 %276
    %280 = vrot.lane.b32.xlu0 %v260, 104
    %v281 = vpop.permute.xlu0 %280
    %282 = vrot.lane.b32.xlu0 %v263, 104
    %v283 = vpop.permute.xlu0 %282
    %v286 = vpack.c.bf16 %v263, %v260
    %v287 = vpack.c.bf16 %v271, %v269
    %v288 = vpack.c.bf16 %v277, %v275
    %v289 = vpack.c.bf16 %v283, %v281
    %291 = vrot.lane.b32.xlu0 %v286, 96
    %v292 = vpop.permute.xlu0 %291
    %vm293 = vcmask 64512
    %v295 = vsel %vm293, %v286, 0
    %v298 = vsel %vm293, %v292, 0
    %300 = vmatprep.subr.bf16.mxu0 0
    %301 = vmatpush1.bf16.xpose.msra.mxu0 %v298
    %302 = vmatprep.subr.bf16.mxu0 0
    %303 = vmatpush1.bf16.xpose.msra.mxu0 0
    %304 = vmatprep.subr.bf16.mxu0 0
    %305 = vmatpush1.bf16.xpose.msra.mxu0 0
    %306 = vmatprep.subr.bf16.mxu0 0
    %307 = vmatpush1.bf16.xpose.msra.mxu0 0
    %308 = vmatprep.subr.bf16.mxu0 0
    %309 = vmatpush1.bf16.xpose.msra.mxu0 0
    %310 = vmatprep.subr.bf16.mxu0 0
    %311 = vmatpush1.bf16.xpose.msra.mxu0 0
    %312 = vmatprep.subr.bf16.mxu0 0
    %313 = vmatpush1.bf16.xpose.msra.mxu0 0
    %314 = vmatprep.subr.bf16.mxu0 0
    %315 = vmatpush1.bf16.xpose.msra.mxu0 0
    %316 = vmatprep.subr.bf16.mxu0 0
    %317 = vmatpush1.bf16.xpose.msra.mxu0 0
    %318 = vmatprep.subr.bf16.mxu0 0
    %319 = vmatpush1.bf16.xpose.msra.mxu0 0
    %320 = vmatprep.subr.bf16.mxu0 0
    %321 = vmatpush1.bf16.xpose.msra.mxu0 0
    %322 = vmatprep.subr.bf16.mxu0 0
    %323 = vmatpush1.bf16.xpose.msra.mxu0 0
    %324 = vmatprep.subr.bf16.mxu0 0
    %325 = vmatpush1.bf16.xpose.msra.mxu0 0
    %326 = vmatprep.subr.bf16.mxu0 0
    %327 = vmatpush1.bf16.xpose.msra.mxu0 0
    %328 = vmatprep.subr.bf16.mxu0 0
    %329 = vmatpush1.bf16.xpose.msra.mxu0 0
    %330 = vmatprep.subr.bf16.mxu0 0
    %331 = vmatpush1.bf16.xpose.msra.mxu0 0
    %332 = vmatprep.mubr.bf16.mxu0 0
    %333 = vmatmul.mubr.bf16.gmra.mrb[0].mxu0 %v295
    %v334 = vpop.f32.mrb[0].mxu0
    %v335 = vadd.f32 0.0, %v334
    %v336 = vpop.f32.mrb[0].mxu0
    %v337 = vpop.f32.mrb[0].mxu0
    %v338 = vadd.f32 0.0, %v337
    %v339 = vpop.f32.mrb[0].mxu0
    %340 = vdwg.mxu0
    %342 = vrot.lane.b32.xlu0 %v287, 96
    %v343 = vpop.permute.xlu0 %342
    %v345 = vsel %vm293, %v287, 0
    %v348 = vsel %vm293, %v343, 0
    %350 = vmatprep.subr.bf16.mxu0 0
    %351 = vmatpush1.bf16.xpose.msra.mxu0 %v348
    %352 = vmatprep.subr.bf16.mxu0 0
    %353 = vmatpush1.bf16.xpose.msra.mxu0 0
    %354 = vmatprep.subr.bf16.mxu0 0
    %355 = vmatpush1.bf16.xpose.msra.mxu0 0
    %356 = vmatprep.subr.bf16.mxu0 0
    %357 = vmatpush1.bf16.xpose.msra.mxu0 0
    %358 = vmatprep.subr.bf16.mxu0 0
    %359 = vmatpush1.bf16.xpose.msra.mxu0 0
    %360 = vmatprep.subr.bf16.mxu0 0
    %361 = vmatpush1.bf16.xpose.msra.mxu0 0
    %362 = vmatprep.subr.bf16.mxu0 0
    %363 = vmatpush1.bf16.xpose.msra.mxu0 0
    %364 = vmatprep.subr.bf16.mxu0 0
    %365 = vmatpush1.bf16.xpose.msra.mxu0 0
    %366 = vmatprep.subr.bf16.mxu0 0
    %367 = vmatpush1.bf16.xpose.msra.mxu0 0
    %368 = vmatprep.subr.bf16.mxu0 0
    %369 = vmatpush1.bf16.xpose.msra.mxu0 0
    %370 = vmatprep.subr.bf16.mxu0 0
    %371 = vmatpush1.bf16.xpose.msra.mxu0 0
    %372 = vmatprep.subr.bf16.mxu0 0
    %373 = vmatpush1.bf16.xpose.msra.mxu0 0
    %374 = vmatprep.subr.bf16.mxu0 0
    %375 = vmatpush1.bf16.xpose.msra.mxu0 0
    %376 = vmatprep.subr.bf16.mxu0 0
    %377 = vmatpush1.bf16.xpose.msra.mxu0 0
    %378 = vmatprep.subr.bf16.mxu0 0
    %379 = vmatpush1.bf16.xpose.msra.mxu0 0
    %380 = vmatprep.subr.bf16.mxu0 0
    %381 = vmatpush1.bf16.xpose.msra.mxu0 0
    %382 = vmatprep.mubr.bf16.mxu0 0
    %383 = vmatmul.mubr.bf16.gmra.mrb[0].mxu0 %v345
    %v384 = vpop.f32.mrb[0].mxu0
    %v385 = vadd.f32 0.0, %v384
    %v386 = vpop.f32.mrb[0].mxu0
    %v387 = vpop.f32.mrb[0].mxu0
    %v388 = vadd.f32 0.0, %v387
    %v389 = vpop.f32.mrb[0].mxu0
    %390 = vdwg.mxu0
    %392 = vrot.lane.b32.xlu0 %v288, 96
    %v393 = vpop.permute.xlu0 %392
    %v395 = vsel %vm293, %v288, 0
    %v398 = vsel %vm293, %v393, 0
    %400 = vmatprep.subr.bf16.mxu0 0
    %401 = vmatpush1.bf16.xpose.msra.mxu0 %v398
    %402 = vmatprep.subr.bf16.mxu0 0
    %403 = vmatpush1.bf16.xpose.msra.mxu0 0
    %404 = vmatprep.subr.bf16.mxu0 0
    %405 = vmatpush1.bf16.xpose.msra.mxu0 0
    %406 = vmatprep.subr.bf16.mxu0 0
    %407 = vmatpush1.bf16.xpose.msra.mxu0 0
    %408 = vmatprep.subr.bf16.mxu0 0
    %409 = vmatpush1.bf16.xpose.msra.mxu0 0
    %410 = vmatprep.subr.bf16.mxu0 0
    %411 = vmatpush1.bf16.xpose.msra.mxu0 0
    %412 = vmatprep.subr.bf16.mxu0 0
    %413 = vmatpush1.bf16.xpose.msra.mxu0 0
    %414 = vmatprep.subr.bf16.mxu0 0
    %415 = vmatpush1.bf16.xpose.msra.mxu0 0
    %416 = vmatprep.subr.bf16.mxu0 0
    %417 = vmatpush1.bf16.xpose.msra.mxu0 0
    %418 = vmatprep.subr.bf16.mxu0 0
    %419 = vmatpush1.bf16.xpose.msra.mxu0 0
    %420 = vmatprep.subr.bf16.mxu0 0
    %421 = vmatpush1.bf16.xpose.msra.mxu0 0
    %422 = vmatprep.subr.bf16.mxu0 0
    %423 = vmatpush1.bf16.xpose.msra.mxu0 0
    %424 = vmatprep.subr.bf16.mxu0 0
    %425 = vmatpush1.bf16.xpose.msra.mxu0 0
    %426 = vmatprep.subr.bf16.mxu0 0
    %427 = vmatpush1.bf16.xpose.msra.mxu0 0
    %428 = vmatprep.subr.bf16.mxu0 0
    %429 = vmatpush1.bf16.xpose.msra.mxu0 0
    %430 = vmatprep.subr.bf16.mxu0 0
    %431 = vmatpush1.bf16.xpose.msra.mxu0 0
    %432 = vmatprep.mubr.bf16.mxu0 0
    %433 = vmatmul.mubr.bf16.gmra.mrb[0].mxu0 %v395
    %v434 = vpop.f32.mrb[0].mxu0
    %v435 = vadd.f32 0.0, %v434
    %v436 = vpop.f32.mrb[0].mxu0
    %v437 = vpop.f32.mrb[0].mxu0
    %v438 = vadd.f32 0.0, %v437
    %v439 = vpop.f32.mrb[0].mxu0
    %440 = vdwg.mxu0
    %442 = vrot.lane.b32.xlu0 %v289, 96
    %v443 = vpop.permute.xlu0 %442
    %v445 = vsel %vm293, %v289, 0
    %v448 = vsel %vm293, %v443, 0
    %450 = vmatprep.subr.bf16.mxu0 0
    %451 = vmatpush1.bf16.xpose.msra.mxu0 %v448
    %452 = vmatprep.subr.bf16.mxu0 0
    %453 = vmatpush1.bf16.xpose.msra.mxu0 0
    %454 = vmatprep.subr.bf16.mxu0 0
    %455 = vmatpush1.bf16.xpose.msra.mxu0 0
    %456 = vmatprep.subr.bf16.mxu0 0
    %457 = vmatpush1.bf16.xpose.msra.mxu0 0
    %458 = vmatprep.subr.bf16.mxu0 0
    %459 = vmatpush1.bf16.xpose.msra.mxu0 0
    %460 = vmatprep.subr.bf16.mxu0 0
    %461 = vmatpush1.bf16.xpose.msra.mxu0 0
    %462 = vmatprep.subr.bf16.mxu0 0
    %463 = vmatpush1.bf16.xpose.msra.mxu0 0
    %464 = vmatprep.subr.bf16.mxu0 0
    %465 = vmatpush1.bf16.xpose.msra.mxu0 0
    %466 = vmatprep.subr.bf16.mxu0 0
    %467 = vmatpush1.bf16.xpose.msra.mxu0 0
    %468 = vmatprep.subr.bf16.mxu0 0
    %469 = vmatpush1.bf16.xpose.msra.mxu0 0
    %470 = vmatprep.subr.bf16.mxu0 0
    %471 = vmatpush1.bf16.xpose.msra.mxu0 0
    %472 = vmatprep.subr.bf16.mxu0 0
    %473 = vmatpush1.bf16.xpose.msra.mxu0 0
    %474 = vmatprep.subr.bf16.mxu0 0
    %475 = vmatpush1.bf16.xpose.msra.mxu0 0
    %476 = vmatprep.subr.bf16.mxu0 0
    %477 = vmatpush1.bf16.xpose.msra.mxu0 0
    %478 = vmatprep.subr.bf16.mxu0 0
    %479 = vmatpush1.bf16.xpose.msra.mxu0 0
    %480 = vmatprep.subr.bf16.mxu0 0
    %481 = vmatpush1.bf16.xpose.msra.mxu0 0
    %482 = vmatprep.mubr.bf16.mxu0 0
    %483 = vmatmul.mubr.bf16.gmra.mrb[0].mxu0 %v445
    %v484 = vpop.f32.mrb[0].mxu0
    %v485 = vadd.f32 0.0, %v484
    %v486 = vpop.f32.mrb[0].mxu0
    %v487 = vpop.f32.mrb[0].mxu0
    %v488 = vadd.f32 0.0, %v487
    %v489 = vpop.f32.mrb[0].mxu0
    %490 = vdwg.mxu0
    %v491 = vmul.f32 %v335, 0.35355338
    %v492 = vmul.f32 %v338, 0.35355338
    %v493 = vmul.f32 %v385, 0.35355338
    %v494 = vmul.f32 %v388, 0.35355338
    %v495 = vmul.f32 %v435, 0.35355338
    %v496 = vmul.f32 %v438, 0.35355338
    %v497 = vmul.f32 %v485, 0.35355338
    %v498 = vmul.f32 %v488, 0.35355338
    %v499 = vld [vmem:[#allocation5] sm:$0xff]
    %v500 = vld [vmem:[#allocation5 + $0x8] sm:$0xff]
    %v501 = vadd.f32 %v491, %v499
    %v502 = vadd.f32 %v492, %v500
    %v503 = vadd.f32 %v493, %v499
    %v504 = vadd.f32 %v494, %v500
    %v505 = vadd.f32 %v495, %v499
    %v506 = vadd.f32 %v496, %v500
    %v507 = vadd.f32 %v497, %v499
    %v508 = vadd.f32 %v498, %v500
    %vm509 = vcmask 130048
    %v510 = vsel %vm509, %v501, -inf
    %511 = vmax.xlane.f32.xlu0 %v510
    %v512 = vpop.xlane.xlu0 %511
    %v513 = vsel %vm509, %v502, -inf
    %514 = vmax.xlane.f32.xlu0 %v513
    %v515 = vpop.xlane.xlu0 %514
    %v516 = vsel %vm509, %v503, -inf
    %517 = vmax.xlane.f32.xlu0 %v516
    %v518 = vpop.xlane.xlu0 %517
    %v519 = vsel %vm509, %v504, -inf
    %520 = vmax.xlane.f32.xlu0 %v519
    %v521 = vpop.xlane.xlu0 %520
    %v522 = vsel %vm509, %v505, -inf
    %523 = vmax.xlane.f32.xlu0 %v522
    %v524 = vpop.xlane.xlu0 %523
    %v525 = vsel %vm509, %v506, -inf
    %526 = vmax.xlane.f32.xlu0 %v525
    %v527 = vpop.xlane.xlu0 %526
    %v528 = vsel %vm509, %v507, -inf
    %529 = vmax.xlane.f32.xlu0 %v528
    %v530 = vpop.xlane.xlu0 %529
    %v531 = vsel %vm509, %v508, -inf
    %532 = vmax.xlane.f32.xlu0 %v531
    %v533 = vpop.xlane.xlu0 %532
    %v534 = vsub.f32 %v501, %v512
    %v535 = vsub.f32 %v502, %v515
    %v536 = vsub.f32 %v503, %v518
    %v537 = vsub.f32 %v504, %v521
    %v538 = vsub.f32 %v505, %v524
    %v539 = vsub.f32 %v506, %v527
    %v540 = vsub.f32 %v507, %v530
    %v541 = vsub.f32 %v508, %v533
    %v542 = vmul.f32 %v534, 1.442695
    %v543 = vpow.pop %v542
    %v544 = vmul.f32 %v535, 1.442695
    %v545 = vpow.pop %v544
    %v546 = vmul.f32 %v536, 1.442695
    %v547 = vpow.pop %v546
    %v548 = vmul.f32 %v537, 1.442695
    %v549 = vpow.pop %v548
    %v550 = vmul.f32 %v538, 1.442695
    %v551 = vpow.pop %v550
    %v552 = vmul.f32 %v539, 1.442695
    %v553 = vpow.pop %v552
    %v554 = vmul.f32 %v540, 1.442695
    %v555 = vpow.pop %v554
    %v556 = vmul.f32 %v541, 1.442695
    %v557 = vpow.pop %v556
    %v558 = vsel %vm509, %v543, 0.0
    %559 = vadd.xlane.f32.xlu0 %v558
    %v560 = vpop.xlane.xlu0 %559
    %v561 = vsel %vm509, %v545, 0.0
    %562 = vadd.xlane.f32.xlu0 %v561
    %v563 = vpop.xlane.xlu0 %562
    %v564 = vsel %vm509, %v547, 0.0
    %565 = vadd.xlane.f32.xlu0 %v564
    %v566 = vpop.xlane.xlu0 %565
    %v567 = vsel %vm509, %v549, 0.0
    %568 = vadd.xlane.f32.xlu0 %v567
    %v569 = vpop.xlane.xlu0 %568
    %v570 = vsel %vm509, %v551, 0.0
    %571 = vadd.xlane.f32.xlu0 %v570
    %v572 = vpop.xlane.xlu0 %571
    %v573 = vsel %vm509, %v553, 0.0
    %574 = vadd.xlane.f32.xlu0 %v573
    %v575 = vpop.xlane.xlu0 %574
    %v576 = vsel %vm509, %v555, 0.0
    %577 = vadd.xlane.f32.xlu0 %v576
    %v578 = vpop.xlane.xlu0 %577
    %v579 = vsel %vm509, %v557, 0.0
    %580 = vadd.xlane.f32.xlu0 %v579
    %v581 = vpop.xlane.xlu0 %580
    %v582 = vrcp.pop %v560
    %v583 = vrcp.pop %v563
    %v584 = vrcp.pop %v566
    %v585 = vrcp.pop %v569
    %v586 = vrcp.pop %v572
    %v587 = vrcp.pop %v575
    %v588 = vrcp.pop %v578
    %v589 = vrcp.pop %v581
    %v590 = vmul.f32 %v543, %v582
    %v591 = vmul.f32 %v545, %v583
    %v592 = vmul.f32 %v547, %v584
    %v593 = vmul.f32 %v549, %v585
    %v594 = vmul.f32 %v551, %v586
    %v595 = vmul.f32 %v553, %v587
    %v596 = vmul.f32 %v555, %v588
    %v597 = vmul.f32 %v557, %v589
    %v598 = vpack.c.bf16 %v591, %v590
    %v599 = vpack.c.bf16 %v593, %v592
    %v600 = vpack.c.bf16 %v595, %v594
    %v601 = vpack.c.bf16 %v597, %v596
    %602 = vrot.lane.b32.xlu0 %v286, 64
    %v603 = vpop.permute.xlu0 %602
    %v606 = vsel %vm509, %v598, 0
    %608 = vmatprep.subr.bf16.mxu0 0
    %609 = vmatpush1.bf16.msra.mxu0 %v603
    %610 = vmatprep.subr.bf16.mxu0 0
    %611 = vmatpush1.bf16.msra.mxu0 0
    %612 = vmatprep.subr.bf16.mxu0 0
    %613 = vmatpush1.bf16.msra.mxu0 0
    %614 = vmatprep.subr.bf16.mxu0 0
    %615 = vmatpush1.bf16.msra.mxu0 0
    %616 = vmatprep.subr.bf16.mxu0 0
    %617 = vmatpush1.bf16.msra.mxu0 0
    %618 = vmatprep.subr.bf16.mxu0 0
    %619 = vmatpush1.bf16.msra.mxu0 0
    %620 = vmatprep.subr.bf16.mxu0 0
    %621 = vmatpush1.bf16.msra.mxu0 0
    %622 = vmatprep.subr.bf16.mxu0 0
    %623 = vmatpush1.bf16.msra.mxu0 0
    %624 = vmatprep.subr.bf16.mxu0 0
    %625 = vmatpush1.bf16.msra.mxu0 0
    %626 = vmatprep.subr.bf16.mxu0 0
    %627 = vmatpush1.bf16.msra.mxu0 0
    %628 = vmatprep.subr.bf16.mxu0 0
    %629 = vmatpush1.bf16.msra.mxu0 0
    %630 = vmatprep.subr.bf16.mxu0 0
    %631 = vmatpush1.bf16.msra.mxu0 0
    %632 = vmatprep.subr.bf16.mxu0 0
    %633 = vmatpush1.bf16.msra.mxu0 0
    %634 = vmatprep.subr.bf16.mxu0 0
    %635 = vmatpush1.bf16.msra.mxu0 0
    %636 = vmatprep.subr.bf16.mxu0 0
    %637 = vmatpush1.bf16.msra.mxu0 0
    %638 = vmatprep.subr.bf16.mxu0 0
    %639 = vmatpush1.bf16.msra.mxu0 0
    %640 = vmatprep.mubr.bf16.mxu0 0
    %641 = vmatmul.mubr.bf16.gmra.mrb[0].mxu0 %v606
    %v642 = vpop.f32.mrb[0].mxu0
    %v643 = vadd.f32 0.0, %v642
    %v644 = vpop.f32.mrb[0].mxu0
    %v645 = vpop.f32.mrb[0].mxu0
    %v646 = vadd.f32 0.0, %v645
    %v647 = vpop.f32.mrb[0].mxu0
    %648 = vdwg.mxu0
    %649 = vrot.lane.b32.xlu0 %v287, 64
    %v650 = vpop.permute.xlu0 %649
    %v653 = vsel %vm509, %v599, 0
    %655 = vmatprep.subr.bf16.mxu0 0
    %656 = vmatpush1.bf16.msra.mxu0 %v650
    %657 = vmatprep.subr.bf16.mxu0 0
    %658 = vmatpush1.bf16.msra.mxu0 0
    %659 = vmatprep.subr.bf16.mxu0 0
    %660 = vmatpush1.bf16.msra.mxu0 0
    %661 = vmatprep.subr.bf16.mxu0 0
    %662 = vmatpush1.bf16.msra.mxu0 0
    %663 = vmatprep.subr.bf16.mxu0 0
    %664 = vmatpush1.bf16.msra.mxu0 0
    %665 = vmatprep.subr.bf16.mxu0 0
    %666 = vmatpush1.bf16.msra.mxu0 0
    %667 = vmatprep.subr.bf16.mxu0 0
    %668 = vmatpush1.bf16.msra.mxu0 0
    %669 = vmatprep.subr.bf16.mxu0 0
    %670 = vmatpush1.bf16.msra.mxu0 0
    %671 = vmatprep.subr.bf16.mxu0 0
    %672 = vmatpush1.bf16.msra.mxu0 0
    %673 = vmatprep.subr.bf16.mxu0 0
    %674 = vmatpush1.bf16.msra.mxu0 0
    %675 = vmatprep.subr.bf16.mxu0 0
    %676 = vmatpush1.bf16.msra.mxu0 0
    %677 = vmatprep.subr.bf16.mxu0 0
    %678 = vmatpush1.bf16.msra.mxu0 0
    %679 = vmatprep.subr.bf16.mxu0 0
    %680 = vmatpush1.bf16.msra.mxu0 0
    %681 = vmatprep.subr.bf16.mxu0 0
    %682 = vmatpush1.bf16.msra.mxu0 0
    %683 = vmatprep.subr.bf16.mxu0 0
    %684 = vmatpush1.bf16.msra.mxu0 0
    %685 = vmatprep.subr.bf16.mxu0 0
    %686 = vmatpush1.bf16.msra.mxu0 0
    %687 = vmatprep.mubr.bf16.mxu0 0
    %688 = vmatmul.mubr.bf16.gmra.mrb[0].mxu0 %v653
    %v689 = vpop.f32.mrb[0].mxu0
    %v690 = vadd.f32 0.0, %v689
    %v691 = vpop.f32.mrb[0].mxu0
    %v692 = vpop.f32.mrb[0].mxu0
    %v693 = vadd.f32 0.0, %v692
    %v694 = vpop.f32.mrb[0].mxu0
    %695 = vdwg.mxu0
    %696 = vrot.lane.b32.xlu0 %v288, 64
    %v697 = vpop.permute.xlu0 %696
    %v700 = vsel %vm509, %v600, 0
    %702 = vmatprep.subr.bf16.mxu0 0
    %703 = vmatpush1.bf16.msra.mxu0 %v697
    %704 = vmatprep.subr.bf16.mxu0 0
    %705 = vmatpush1.bf16.msra.mxu0 0
    %706 = vmatprep.subr.bf16.mxu0 0
    %707 = vmatpush1.bf16.msra.mxu0 0
    %708 = vmatprep.subr.bf16.mxu0 0
    %709 = vmatpush1.bf16.msra.mxu0 0
    %710 = vmatprep.subr.bf16.mxu0 0
    %711 = vmatpush1.bf16.msra.mxu0 0
    %712 = vmatprep.subr.bf16.mxu0 0
    %713 = vmatpush1.bf16.msra.mxu0 0
    %714 = vmatprep.subr.bf16.mxu0 0
    %715 = vmatpush1.bf16.msra.mxu0 0
    %716 = vmatprep.subr.bf16.mxu0 0
    %717 = vmatpush1.bf16.msra.mxu0 0
    %718 = vmatprep.subr.bf16.mxu0 0
    %719 = vmatpush1.bf16.msra.mxu0 0
    %720 = vmatprep.subr.bf16.mxu0 0
    %721 = vmatpush1.bf16.msra.mxu0 0
    %722 = vmatprep.subr.bf16.mxu0 0
    %723 = vmatpush1.bf16.msra.mxu0 0
    %724 = vmatprep.subr.bf16.mxu0 0
    %725 = vmatpush1.bf16.msra.mxu0 0
    %726 = vmatprep.subr.bf16.mxu0 0
    %727 = vmatpush1.bf16.msra.mxu0 0
    %728 = vmatprep.subr.bf16.mxu0 0
    %729 = vmatpush1.bf16.msra.mxu0 0
    %730 = vmatprep.subr.bf16.mxu0 0
    %731 = vmatpush1.bf16.msra.mxu0 0
    %732 = vmatprep.subr.bf16.mxu0 0
    %733 = vmatpush1.bf16.msra.mxu0 0
    %734 = vmatprep.mubr.bf16.mxu0 0
    %735 = vmatmul.mubr.bf16.gmra.mrb[0].mxu0 %v700
    %v736 = vpop.f32.mrb[0].mxu0
    %v737 = vadd.f32 0.0, %v736
    %v738 = vpop.f32.mrb[0].mxu0
    %v739 = vpop.f32.mrb[0].mxu0
    %v740 = vadd.f32 0.0, %v739
    %v741 = vpop.f32.mrb[0].mxu0
    %742 = vdwg.mxu0
    %743 = vrot.lane.b32.xlu0 %v289, 64
    %v744 = vpop.permute.xlu0 %743
    %v747 = vsel %vm509, %v601, 0
    %749 = vmatprep.subr.bf16.mxu0 0
    %750 = vmatpush1.bf16.msra.mxu0 %v744
    %751 = vmatprep.subr.bf16.mxu0 0
    %752 = vmatpush1.bf16.msra.mxu0 0
    %753 = vmatprep.subr.bf16.mxu0 0
    %754 = vmatpush1.bf16.msra.mxu0 0
    %755 = vmatprep.subr.bf16.mxu0 0
    %756 = vmatpush1.bf16.msra.mxu0 0
    %757 = vmatprep.subr.bf16.mxu0 0
    %758 = vmatpush1.bf16.msra.mxu0 0
    %759 = vmatprep.subr.bf16.mxu0 0
    %760 = vmatpush1.bf16.msra.mxu0 0
    %761 = vmatprep.subr.bf16.mxu0 0
    %762 = vmatpush1.bf16.msra.mxu0 0
    %763 = vmatprep.subr.bf16.mxu0 0
    %764 = vmatpush1.bf16.msra.mxu0 0
    %765 = vmatprep.subr.bf16.mxu0 0
    %766 = vmatpush1.bf16.msra.mxu0 0
    %767 = vmatprep.subr.bf16.mxu0 0
    %768 = vmatpush1.bf16.msra.mxu0 0
    %769 = vmatprep.subr.bf16.mxu0 0
    %770 = vmatpush1.bf16.msra.mxu0 0
    %771 = vmatprep.subr.bf16.mxu0 0
    %772 = vmatpush1.bf16.msra.mxu0 0
    %773 = vmatprep.subr.bf16.mxu0 0
    %774 = vmatpush1.bf16.msra.mxu0 0
    %775 = vmatprep.subr.bf16.mxu0 0
    %776 = vmatpush1.bf16.msra.mxu0 0
    %777 = vmatprep.subr.bf16.mxu0 0
    %778 = vmatpush1.bf16.msra.mxu0 0
    %779 = vmatprep.subr.bf16.mxu0 0
    %780 = vmatpush1.bf16.msra.mxu0 0
    %781 = vmatprep.mubr.bf16.mxu0 0
    %782 = vmatmul.mubr.bf16.gmra.mrb[0].mxu0 %v747
    %v783 = vpop.f32.mrb[0].mxu0
    %v784 = vadd.f32 0.0, %v783
    %v785 = vpop.f32.mrb[0].mxu0
    %v786 = vpop.f32.mrb[0].mxu0
    %v787 = vadd.f32 0.0, %v786
    %v788 = vpop.f32.mrb[0].mxu0
    %789 = vdwg.mxu0
    %792 = vrot.lane.b32.xlu0 %v690, 8
    %v793 = vpop.permute.xlu0 %792
    %794 = vrot.lane.b32.xlu0 %v693, 8
    %v795 = vpop.permute.xlu0 %794
    %800 = vrot.lane.b32.xlu0 %v737, 16
    %v801 = vpop.permute.xlu0 %800
    %802 = vrot.lane.b32.xlu0 %v740, 16
    %v803 = vpop.permute.xlu0 %802
    %808 = vrot.lane.b32.xlu0 %v784, 24
    %v809 = vpop.permute.xlu0 %808
    %810 = vrot.lane.b32.xlu0 %v787, 24
    %v811 = vpop.permute.xlu0 %810
    %v814 = vsel %vm293, %v643, %v793
    %v815 = vsel %vm293, %v646, %v795
    %v816 = vsel %vm509, %v814, %v801
    %v817 = vsel %vm509, %v815, %v803
    %vm818 = vcmask 195584
    %v819 = vsel %vm818, %v816, %v809
    %v820 = vsel %vm818, %v817, %v811
    %v821 = vpack.c.bf16 %v820, %v819
    %v822 = vld [vmem:[%s6] sm:$0xf]
    %v823 = vld [vmem:[%s6 + $0x4] sm:$0xf]
    %v824 = vld [vmem:[%s6 + $0x8] sm:$0xf]
    %v825 = vld [vmem:[%s6 + $0xc] sm:$0xf]
    %v826 = vld [vmem:[#allocation10] sm:$0x1]
    %v828 = vlaneseq
    %v829 = vshrl.u32 %v828, 7
    %v830 = vsub.s32 0, %v829
    %v831 = vrot.slane %v826, %v830
    %v837 = vunpack.c.l.b16 %v822
    %v838 = vunpack.c.l.b16 %v823
    %v839 = vunpack.c.l.b16 %v824
    %v840 = vunpack.c.l.b16 %v825
    %v841 = vpack.c.b16 %v838, %v837
    %v842 = vpack.c.b16 %v840, %v839
    %v846 = vsel %vm154, %v821, 0
    %848 = vmatprep.subr.bf16.mxu0 0
    %849 = vmatpush1.bf16.msra.mxu0 %v841
    %850 = vmatprep.subr.bf16.mxu0 0
    %851 = vmatpush1.bf16.msra.mxu0 %v842
    %852 = vmatprep.subr.bf16.mxu0 0
    %853 = vmatpush1.bf16.msra.mxu0 0
    %854 = vmatprep.subr.bf16.mxu0 0
    %855 = vmatpush1.bf16.msra.mxu0 0
    %856 = vmatprep.subr.bf16.mxu0 0
    %857 = vmatpush1.bf16.msra.mxu0 0
    %858 = vmatprep.subr.bf16.mxu0 0
    %859 = vmatpush1.bf16.msra.mxu0 0
    %860 = vmatprep.subr.bf16.mxu0 0
    %861 = vmatpush1.bf16.msra.mxu0 0
    %862 = vmatprep.subr.bf16.mxu0 0
    %863 = vmatpush1.bf16.msra.mxu0 0
    %864 = vmatprep.subr.bf16.mxu0 0
    %865 = vmatpush1.bf16.msra.mxu0 0
    %866 = vmatprep.subr.bf16.mxu0 0
    %867 = vmatpush1.bf16.msra.mxu0 0
    %868 = vmatprep.subr.bf16.mxu0 0
    %869 = vmatpush1.bf16.msra.mxu0 0
    %870 = vmatprep.subr.bf16.mxu0 0
    %871 = vmatpush1.bf16.msra.mxu0 0
    %872 = vmatprep.subr.bf16.mxu0 0
    %873 = vmatpush1.bf16.msra.mxu0 0
    %874 = vmatprep.subr.bf16.mxu0 0
    %875 = vmatpush1.bf16.msra.mxu0 0
    %876 = vmatprep.subr.bf16.mxu0 0
    %877 = vmatpush1.bf16.msra.mxu0 0
    %878 = vmatprep.subr.bf16.mxu0 0
    %879 = vmatpush1.bf16.msra.mxu0 0
    %880 = vmatprep.mubr.bf16.mxu0 0
    %881 = vmatmul.mubr.bf16.gmra.mrb[0].mxu0 %v846
    %v882 = vpop.f32.mrb[0].mxu0
    %v883 = vadd.f32 %v831, %v882
    %v884 = vpop.f32.mrb[0].mxu0
    %v885 = vpop.f32.mrb[0].mxu0
    %v886 = vadd.f32 %v831, %v885
    %v887 = vpop.f32.mrb[0].mxu0
    %888 = vdwg.mxu0
    %v889 = vadd.f32 %v150, %v883
    %v890 = vadd.f32 %v151, %v886
    %v891 = vld [vmem:[#allocation11] sm:$0x1]
    %v892 = vld [vmem:[#allocation13] sm:$0x1]
    %v893 = vsel %vm154, %v889, 0.0
    %894 = vadd.xlane.f32.xlu0 %v893
    %v895 = vpop.xlane.xlu0 %894
    %v896 = vsel %vm154, %v890, 0.0
    %897 = vadd.xlane.f32.xlu0 %v896
    %v898 = vpop.xlane.xlu0 %897
    %v899 = vmul.f32 %v895, %v161
    %v900 = vmul.f32 %v898, %v161
    %v901 = vsub.f32 %v889, %v899
    %v902 = vsub.f32 %v890, %v900
    %v903 = vmul.f32 %v901, %v901
    %v904 = vmul.f32 %v902, %v902
    %v905 = vsel %vm154, %v903, 0.0
    %906 = vadd.xlane.f32.xlu0 %v905
    %v907 = vpop.xlane.xlu0 %906
    %v908 = vsel %vm154, %v904, 0.0
    %909 = vadd.xlane.f32.xlu0 %v908
    %v910 = vpop.xlane.xlu0 %909
    %v911 = vmul.f32 %v907, %v161
    %v912 = vmul.f32 %v910, %v161
    %v913 = vadd.f32 %v911, 1e-05
    %v914 = vadd.f32 %v912, 1e-05
    %v915 = vrsqrt.pop %v913
    %v916 = vrsqrt.pop %v914
    %v917 = vmul.f32 %v901, %v915
    %v918 = vmul.f32 %v902, %v916
    %v920 = vlaneseq
    %v921 = vshrl.u32 %v920, 7
    %v922 = vsub.s32 0, %v921
    %v923 = vrot.slane %v891, %v922
    %v925 = vmul.f32 %v917, %v923
    %v926 = vmul.f32 %v918, %v923
    %v928 = vlaneseq
    %v929 = vshrl.u32 %v928, 7
    %v930 = vsub.s32 0, %v929
    %v931 = vrot.slane %v892, %v930
    %v933 = vadd.f32 %v925, %v931
    %v934 = vadd.f32 %v926, %v931
    %v935 = vpack.c.bf16 %v934, %v933
    %v936 = vld [vmem:[%s10] sm:$0xf]
    %v937 = vld [vmem:[%s10 + $0x4] sm:$0xf]
    %v938 = vld [vmem:[%s10 + $0x8] sm:$0xf]
    %v939 = vld [vmem:[%s10 + $0xc] sm:$0xf]
    %v940 = vld [vmem:[%s11] sm:$0x1]
    %v942 = vlaneseq
    %v943 = vshrl.u32 %v942, 7
    %v944 = vsub.s32 0, %v943
    %v945 = vrot.slane %v940, %v944
    %v951 = vunpack.c.l.b16 %v936
    %v952 = vunpack.c.l.b16 %v937
    %v953 = vunpack.c.l.b16 %v938
    %v954 = vunpack.c.l.b16 %v939
    %v955 = vpack.c.b16 %v952, %v951
    %v956 = vpack.c.b16 %v954, %v953
    %v960 = vsel %vm154, %v935, 0
    %962 = vmatprep.subr.bf16.mxu0 0
    %963 = vmatpush1.bf16.msra.mxu0 %v955
    %964 = vmatprep.subr.bf16.mxu0 0
    %965 = vmatpush1.bf16.msra.mxu0 %v956
    %966 = vmatprep.subr.bf16.mxu0 0
    %967 = vmatpush1.bf16.msra.mxu0 0
    %968 = vmatprep.subr.bf16.mxu0 0
    %969 = vmatpush1.bf16.msra.mxu0 0
    %970 = vmatprep.subr.bf16.mxu0 0
    %971 = vmatpush1.bf16.msra.mxu0 0
    %972 = vmatprep.subr.bf16.mxu0 0
    %973 = vmatpush1.bf16.msra.mxu0 0
    %974 = vmatprep.subr.bf16.mxu0 0
    %975 = vmatpush1.bf16.msra.mxu0 0
    %976 = vmatprep.subr.bf16.mxu0 0
    %977 = vmatpush1.bf16.msra.mxu0 0
    %978 = vmatprep.subr.bf16.mxu0 0
    %979 = vmatpush1.bf16.msra.mxu0 0
    %980 = vmatprep.subr.bf16.mxu0 0
    %981 = vmatpush1.bf16.msra.mxu0 0
    %982 = vmatprep.subr.bf16.mxu0 0
    %983 = vmatpush1.bf16.msra.mxu0 0
    %984 = vmatprep.subr.bf16.mxu0 0
    %985 = vmatpush1.bf16.msra.mxu0 0
    %986 = vmatprep.subr.bf16.mxu0 0
    %987 = vmatpush1.bf16.msra.mxu0 0
    %988 = vmatprep.subr.bf16.mxu0 0
    %989 = vmatpush1.bf16.msra.mxu0 0
    %990 = vmatprep.subr.bf16.mxu0 0
    %991 = vmatpush1.bf16.msra.mxu0 0
    %992 = vmatprep.subr.bf16.mxu0 0
    %993 = vmatpush1.bf16.msra.mxu0 0
    %994 = vmatprep.mubr.bf16.mxu0 0
    %995 = vmatmul.mubr.bf16.gmra.mrb[0].mxu0 %v960
    %v996 = vpop.f32.mrb[0].mxu0
    %v997 = vadd.f32 %v945, %v996
    %v998 = vpop.f32.mrb[0].mxu0
    %v999 = vpop.f32.mrb[0].mxu0
    %v1000 = vadd.f32 %v945, %v999
    %v1001 = vpop.f32.mrb[0].mxu0
    %1002 = vdwg.mxu0
    %v1003 = vmul.f32 %v997, 0.5
    %v1004 = vmul.f32 %v1000, 0.5
    %v1005 = vmul.f32 %v997, 0.70710677
    %v1006 = vmul.f32 %v1000, 0.70710677
    %v1007 = verf.f32.pop %v1005
    %v1008 = verf.f32.pop %v1006
    %v1009 = vadd.f32 %v1007, 1.0
    %v1010 = vadd.f32 %v1008, 1.0
    %v1011 = vmul.f32 %v1003, %v1009
    %v1012 = vmul.f32 %v1004, %v1010
    %v1013 = vpack.c.bf16 %v1012, %v1011
    %v1014 = vld [vmem:[#allocation14] sm:$0xf]
    %v1015 = vld [vmem:[#allocation14 + $0x4] sm:$0xf]
    %v1016 = vld [vmem:[#allocation14 + $0x8] sm:$0xf]
    %v1017 = vld [vmem:[#allocation14 + $0xc] sm:$0xf]
    %v1018 = vld [vmem:[%s13] sm:$0x1]
    %v1020 = vlaneseq
    %v1021 = vshrl.u32 %v1020, 7
    %v1022 = vsub.s32 0, %v1021
    %v1023 = vrot.slane %v1018, %v1022
    %v1029 = vunpack.c.l.b16 %v1014
    %v1030 = vunpack.c.l.b16 %v1015
    %v1031 = vunpack.c.l.b16 %v1016
    %v1032 = vunpack.c.l.b16 %v1017
    %v1033 = vpack.c.b16 %v1030, %v1029
    %v1034 = vpack.c.b16 %v1032, %v1031
    %v1038 = vsel %vm154, %v1013, 0
    %1040 = vmatprep.subr.bf16.mxu0 0
    %1041 = vmatpush1.bf16.msra.mxu0 %v1033
    %1042 = vmatprep.subr.bf16.mxu0 0
    %1043 = vmatpush1.bf16.msra.mxu0 %v1034
    %1044 = vmatprep.subr.bf16.mxu0 0
    %1045 = vmatpush1.bf16.msra.mxu0 0
    %1046 = vmatprep.subr.bf16.mxu0 0
    %1047 = vmatpush1.bf16.msra.mxu0 0
    %1048 = vmatprep.subr.bf16.mxu0 0
    %1049 = vmatpush1.bf16.msra.mxu0 0
    %1050 = vmatprep.subr.bf16.mxu0 0
    %1051 = vmatpush1.bf16.msra.mxu0 0
    %1052 = vmatprep.subr.bf16.mxu0 0
    %1053 = vmatpush1.bf16.msra.mxu0 0
    %1054 = vmatprep.subr.bf16.mxu0 0
    %1055 = vmatpush1.bf16.msra.mxu0 0
    %1056 = vmatprep.subr.bf16.mxu0 0
    %1057 = vmatpush1.bf16.msra.mxu0 0
    %1058 = vmatprep.subr.bf16.mxu0 0
    %1059 = vmatpush1.bf16.msra.mxu0 0
    %1060 = vmatprep.subr.bf16.mxu0 0
    %1061 = vmatpush1.bf16.msra.mxu0 0
    %1062 = vmatprep.subr.bf16.mxu0 0
    %1063 = vmatpush1.bf16.msra.mxu0 0
    %1064 = vmatprep.subr.bf16.mxu0 0
    %1065 = vmatpush1.bf16.msra.mxu0 0
    %1066 = vmatprep.subr.bf16.mxu0 0
    %1067 = vmatpush1.bf16.msra.mxu0 0
    %1068 = vmatprep.subr.bf16.mxu0 0
    %1069 = vmatpush1.bf16.msra.mxu0 0
    %1070 = vmatprep.subr.bf16.mxu0 0
    %1071 = vmatpush1.bf16.msra.mxu0 0
    %1072 = vmatprep.mubr.bf16.mxu0 0
    %1073 = vmatmul.mubr.bf16.gmra.mrb[0].mxu0 %v1038
    %v1074 = vpop.f32.mrb[0].mxu0
    %v1075 = vadd.f32 %v1023, %v1074
    %v1076 = vpop.f32.mrb[0].mxu0
    %v1077 = vpop.f32.mrb[0].mxu0
    %v1078 = vadd.f32 %v1023, %v1077
    %v1079 = vpop.f32.mrb[0].mxu0
    %1080 = vdwg.mxu0
    %v1081 = vadd.f32 %v889, %v1075
    %v1082 = vadd.f32 %v890, %v1078
    %1083 = vst.msk [vmem:[#allocation16] sm:$0xff] %vm154, %v1081
    %1084 = vst.msk [vmem:[#allocation16 + $0x8] sm:$0xff] %vm154, %v1082
    // Predicated region
    $region90: #{tpu_custom_call.1} parent=1 // pred_check
      _
    $region91: #{tpu_custom_call.1} parent=1 // pred_check_branch
      %1086 = sbr.rel (0) target = $region93
    $region92: #{tpu_custom_call.1} parent=1 // pred_region
      %s1088 = ssub.s32 256, 256
      %1089 = vsyncadd [#allocation4], %s1088
      %s1090 = sshll.u32 [#allocation16], 4
      %s1091 = int_to_ptr.vmem [resolvable:$true] %s1090
      %1096 = dma.vmem_to_hbm [thread:$0]  %s1091, 256, %s14, [#allocation4], 128, 128, 8
    $region93: #{tpu_custom_call.1} parent=1 // pred_fallthru
      _
    // Predicated region
    $region94: #{tpu_custom_call.1} parent=1 // pred_check
      _
    $region95: #{tpu_custom_call.1} parent=1 // pred_check_branch
      %1098 = sbr.rel (0) target = $region97
    $region96: #{tpu_custom_call.1} parent=1 // pred_region
      %1099 = dma.done [#allocation4], 256
    $region97: #{tpu_custom_call.1} parent=1 // pred_fallthru
      _
    %1100 = vsyncpa [#allocation3], 1
    %1101 = vsyncpa [#allocation6], 1
    %1102 = vsyncpa [#allocation9], 1
    %1103 = vsyncpa [#allocation12], 1
    %1104 = vsyncpa [#allocation15], 1
    %1105 = vsyncpa [#allocation4], 1

</llo_original>
